<compile_context>
chip_gen: v6e
topology: v6e:2x2x1
jax: 0.10.0
libtpu: 0.0.40
codegen_flags: <defaults>
</compile_context>

<pallas_src>
import jax
import jax.numpy as jnp
from jax.experimental import pallas as pl
from jax.experimental.pallas import tpu as pltpu


def _fused_embed_pool_classify_kernel(ids_ref, ew_ref, b_ref, out_ref):
    """ids:(TB,S) i32, ew:(V,Cp) f32 (= E @ W / S), b:(1,Cp) f32 -> out:(TB,Cp) f32."""
    TB, S = ids_ref.shape
    V = ew_ref.shape[0]

    ids = ids_ref[...]                                           # (TB, S) int32
    vocab_iota = jax.lax.broadcasted_iota(jnp.int32, (1, V), 1)  # (1, V), hoisted

    # Token-count matrix: counts[b, v] = #{s : ids[b, s] == v}.
    # int32 accumulate (bool adds); one f32 convert just before the matmul.
    counts = jnp.zeros((TB, V), dtype=jnp.int32)
    for s in range(S):                                           # S small, static unroll
        counts = counts + (ids[:, s:s + 1] == vocab_iota)

    # Gather + avg-pool + classify fused into ONE MXU pass:
    #   counts @ (E @ W / S)  ==  mean_s E[x[b,s]] @ W        (exact up to f32 order)
    logits = jnp.dot(counts.astype(jnp.float32), ew_ref[...],
                     preferred_element_type=jnp.float32)         # (TB, Cp) lane-dense
    out_ref[...] = logits + b_ref[...]


def _batch_tiling(B, block_b):
    """Pick a batch tile TB and padded batch B_pad.

    Prefers zero padding: a block equal to the full batch dim is always legal
    (block dim == array dim).  When B >= 16, tile so the grid has >= 2 steps
    (v7x megacore) with a multiple-of-8 tile that divides B_pad exactly.
    """
    block_b = max(8, (block_b // 8) * 8)
    if B < 16:
        return B, B                                  # single block, no padding
    B_pad = ((B + 7) // 8) * 8                       # pads at most 7 rows
    tb = max(8, min(block_b, (B_pad // 2) // 8 * 8))
    while B_pad % tb != 0:                           # shrink to a divisor (hits 8 worst case)
        tb -= 8
    return tb, B_pad


def embed_pool_classify(x_tokens, embedding, w, b, *, block_b=256):
    """x_tokens:(B,S) int, embedding:(V,D) f32, w:(D,C) f32, b:(C,) f32 -> (B,C) f32."""
    x_tokens = x_tokens.astype(jnp.int32)
    B, S = x_tokens.shape
    V, D = embedding.shape
    C = w.shape[1]
    C_pad = 128                                       # lane-dense output stores

    # Fold the classifier and the 1/S pooling scale into one (V, 128) table.
    ew_small = (embedding.astype(jnp.float32) @ w.astype(jnp.float32)) * (1.0 / S)
    ew = jnp.zeros((V, C_pad), jnp.float32).at[:, :C].set(ew_small)
    b_pad = jnp.zeros((1, C_pad), jnp.float32).at[0, :C].set(b.astype(jnp.float32))

    TB, B_pad = _batch_tiling(B, block_b)
    if B_pad != B:
        # At most 7 pad rows (token id 0), sliced off below — negligible HBM.
        x_tokens = jnp.pad(x_tokens, ((0, B_pad - B), (0, 0)))
    grid = (B_pad // TB,)

    flops = 2 * B_pad * V * C_pad + B_pad * S * V
    bytes_accessed = (B_pad * S * 4 + V * C_pad * 4 + C_pad * 4 + B_pad * C_pad * 4)

    out = pl.pallas_call(
        _fused_embed_pool_classify_kernel,
        out_shape=jax.ShapeDtypeStruct((B_pad, C_pad), jnp.float32),
        grid_spec=pltpu.PrefetchScalarGridSpec(
            num_scalar_prefetch=0,
            grid=grid,
            in_specs=[
                pl.BlockSpec((TB, S), lambda i: (i, 0)),       # tokens: tiled over batch
                pl.BlockSpec((V, C_pad), lambda i: (0, 0)),    # fused E@W/S table: resident
                pl.BlockSpec((1, C_pad), lambda i: (0, 0)),    # bias: resident
            ],
            out_specs=pl.BlockSpec((TB, C_pad), lambda i: (i, 0)),
        ),
        compiler_params=pltpu.CompilerParams(
            dimension_semantics=("parallel",),                 # megacore split on v7x
            vmem_limit_bytes=8 * 1024 * 1024,
        ),
        cost_estimate=pl.CostEstimate(
            flops=flops, transcendentals=0, bytes_accessed=bytes_accessed),
    )(x_tokens, ew, b_pad)

    return out[:B, :C]


def torch_model_forward(x_tokens, params, y=None):
    """Replicates TorchModel.forward.

    x_tokens: (B, S) int32 token ids.
    params: dict with 'embedding' (V, D), 'w' (D, C), 'b' (C,).
    Returns logits (B, C) if y is None, else mean cross-entropy loss (scalar).
    """
    logits = embed_pool_classify(x_tokens, params["embedding"],
                                 params["w"], params["b"])
    if y is None:
        return logits
    # nn.CrossEntropyLoss (mean reduction) — plain JAX glue on the tiny (B, C) logits.
    logz = jax.nn.logsumexp(logits, axis=-1)
    nll = logz - jnp.take_along_axis(logits, y[:, None], axis=-1)[:, 0]
    return jnp.mean(nll)


if __name__ == "__main__":
    # Small shapes consistent with the module.
    vector_dim = 32          # D
    sentence_length = 8      # S
    vocab_size = 30          # len(vocab)
    batch = 2                # B
    num_classes = sentence_length + 1  # C = 9

    key = jax.random.PRNGKey(0)
    k_emb, k_w, k_b, k_x, k_y = jax.random.split(key, 5)

    params = {
        "embedding": jax.random.normal(k_emb, (vocab_size, vector_dim), jnp.float32),
        "w": jax.random.normal(k_w, (vector_dim, num_classes), jnp.float32) * 0.1,
        "b": jax.random.normal(k_b, (num_classes,), jnp.float32) * 0.1,
    }

    x = jax.random.randint(k_x, (batch, sentence_length), 0, vocab_size, jnp.int32)
    y = jax.random.randint(k_y, (batch,), 0, num_classes, jnp.int32)

    logits = torch_model_forward(x, params)          # inference path (y=None)
    jax.block_until_ready(logits)

    loss = torch_model_forward(x, params, y)         # training path (scalar loss)
    jax.block_until_ready(loss)

    # Pure-JAX reference check of the fused kernel result.
    emb_ref = jnp.take(params["embedding"], x, axis=0)
    ref = jnp.mean(emb_ref, axis=1) @ params["w"] + params["b"]
    assert logits.shape == (batch, num_classes)
    assert jnp.allclose(logits, ref, atol=1e-4, rtol=1e-4)
    assert jnp.isfinite(loss)

    print("KERNEL_OK")
</pallas_src>

<mosaic_0001>
module attributes {stable_mosaic.version = 11 : i64} {
  func.func @_fused_embed_pool_classify_kernel(%arg0: i32, %arg1: memref<2x8xi32, #tpu.memory_space<vmem>>, %arg2: memref<30x128xf32, #tpu.memory_space<vmem>>, %arg3: memref<1x128xf32, #tpu.memory_space<vmem>>, %arg4: memref<2x128xf32, #tpu.memory_space<vmem>>) attributes {dimension_semantics = [#tpu.dimension_semantics<parallel>], iteration_bounds = array<i64: 1>, scalar_prefetch = 0 : i64, scratch_operands = 0 : i64, tpu.core_type = #tpu.core_type<tc>, window_params = [{transform_indices = @transform_0, window_bounds = array<i64: 2, 8>}, {pipeline_mode = #tpu.pipeline_mode<synchronous>, transform_indices = @transform_1, window_bounds = array<i64: 30, 128>}, {pipeline_mode = #tpu.pipeline_mode<synchronous>, transform_indices = @transform_2, window_bounds = array<i64: 1, 128>}, {transform_indices = @transform_3, window_bounds = array<i64: 2, 128>}]} {
    %c0 = arith.constant 0 : index
    %c0_0 = arith.constant 0 : index
    %0 = vector.load %arg1[%c0, %c0_0] : memref<2x8xi32, #tpu.memory_space<vmem>>, vector<2x8xi32>
    %1 = tpu.iota {dimensions = array<i32: 1>} : vector<1x30xi32>
    %c0_i32 = arith.constant 0 : i32
    %2 = vector.broadcast %c0_i32 : i32 to vector<2x30xi32>
    %3 = vector.extract_strided_slice %0 {offsets = [0, 0], sizes = [2, 1], strides = [1, 1]} : vector<2x8xi32> to vector<2x1xi32>
    %4 = vector.broadcast %3 : vector<2x1xi32> to vector<2x30xi32>
    %5 = vector.broadcast %1 : vector<1x30xi32> to vector<2x30xi32>
    %6 = arith.cmpi eq, %4, %5 : vector<2x30xi32>
    %7 = arith.extui %6 : vector<2x30xi1> to vector<2x30xi32>
    %8 = arith.addi %2, %7 : vector<2x30xi32>
    %9 = vector.extract_strided_slice %0 {offsets = [0, 1], sizes = [2, 1], strides = [1, 1]} : vector<2x8xi32> to vector<2x1xi32>
    %10 = vector.broadcast %9 : vector<2x1xi32> to vector<2x30xi32>
    %11 = vector.broadcast %1 : vector<1x30xi32> to vector<2x30xi32>
    %12 = arith.cmpi eq, %10, %11 : vector<2x30xi32>
    %13 = arith.extui %12 : vector<2x30xi1> to vector<2x30xi32>
    %14 = arith.addi %8, %13 : vector<2x30xi32>
    %15 = vector.extract_strided_slice %0 {offsets = [0, 2], sizes = [2, 1], strides = [1, 1]} : vector<2x8xi32> to vector<2x1xi32>
    %16 = vector.broadcast %15 : vector<2x1xi32> to vector<2x30xi32>
    %17 = vector.broadcast %1 : vector<1x30xi32> to vector<2x30xi32>
    %18 = arith.cmpi eq, %16, %17 : vector<2x30xi32>
    %19 = arith.extui %18 : vector<2x30xi1> to vector<2x30xi32>
    %20 = arith.addi %14, %19 : vector<2x30xi32>
    %21 = vector.extract_strided_slice %0 {offsets = [0, 3], sizes = [2, 1], strides = [1, 1]} : vector<2x8xi32> to vector<2x1xi32>
    %22 = vector.broadcast %21 : vector<2x1xi32> to vector<2x30xi32>
    %23 = vector.broadcast %1 : vector<1x30xi32> to vector<2x30xi32>
    %24 = arith.cmpi eq, %22, %23 : vector<2x30xi32>
    %25 = arith.extui %24 : vector<2x30xi1> to vector<2x30xi32>
    %26 = arith.addi %20, %25 : vector<2x30xi32>
    %27 = vector.extract_strided_slice %0 {offsets = [0, 4], sizes = [2, 1], strides = [1, 1]} : vector<2x8xi32> to vector<2x1xi32>
    %28 = vector.broadcast %27 : vector<2x1xi32> to vector<2x30xi32>
    %29 = vector.broadcast %1 : vector<1x30xi32> to vector<2x30xi32>
    %30 = arith.cmpi eq, %28, %29 : vector<2x30xi32>
    %31 = arith.extui %30 : vector<2x30xi1> to vector<2x30xi32>
    %32 = arith.addi %26, %31 : vector<2x30xi32>
    %33 = vector.extract_strided_slice %0 {offsets = [0, 5], sizes = [2, 1], strides = [1, 1]} : vector<2x8xi32> to vector<2x1xi32>
    %34 = vector.broadcast %33 : vector<2x1xi32> to vector<2x30xi32>
    %35 = vector.broadcast %1 : vector<1x30xi32> to vector<2x30xi32>
    %36 = arith.cmpi eq, %34, %35 : vector<2x30xi32>
    %37 = arith.extui %36 : vector<2x30xi1> to vector<2x30xi32>
    %38 = arith.addi %32, %37 : vector<2x30xi32>
    %39 = vector.extract_strided_slice %0 {offsets = [0, 6], sizes = [2, 1], strides = [1, 1]} : vector<2x8xi32> to vector<2x1xi32>
    %40 = vector.broadcast %39 : vector<2x1xi32> to vector<2x30xi32>
    %41 = vector.broadcast %1 : vector<1x30xi32> to vector<2x30xi32>
    %42 = arith.cmpi eq, %40, %41 : vector<2x30xi32>
    %43 = arith.extui %42 : vector<2x30xi1> to vector<2x30xi32>
    %44 = arith.addi %38, %43 : vector<2x30xi32>
    %45 = vector.extract_strided_slice %0 {offsets = [0, 7], sizes = [2, 1], strides = [1, 1]} : vector<2x8xi32> to vector<2x1xi32>
    %46 = vector.broadcast %45 : vector<2x1xi32> to vector<2x30xi32>
    %47 = vector.broadcast %1 : vector<1x30xi32> to vector<2x30xi32>
    %48 = arith.cmpi eq, %46, %47 : vector<2x30xi32>
    %49 = arith.extui %48 : vector<2x30xi1> to vector<2x30xi32>
    %50 = arith.addi %44, %49 : vector<2x30xi32>
    %51 = arith.sitofp %50 : vector<2x30xi32> to vector<2x30xf32>
    %c0_1 = arith.constant 0 : index
    %c0_2 = arith.constant 0 : index
    %52 = vector.load %arg2[%c0_1, %c0_2] : memref<30x128xf32, #tpu.memory_space<vmem>>, vector<30x128xf32>
    %cst = arith.constant dense<0.000000e+00> : vector<2x128xf32>
    %53 = tpu.matmul %51, %52, %cst {dimension_numbers = #tpu.dot_dimension_numbers<[1], [0], [0], [1], [0, 0, 1, 1], [], []>} : vector<2x30xf32>, vector<30x128xf32>, vector<2x128xf32> -> vector<2x128xf32>
    %c0_3 = arith.constant 0 : index
    %c0_4 = arith.constant 0 : index
    %54 = vector.load %arg3[%c0_3, %c0_4] : memref<1x128xf32, #tpu.memory_space<vmem>>, vector<1x128xf32>
    %55 = vector.broadcast %54 : vector<1x128xf32> to vector<2x128xf32>
    %56 = arith.addf %53, %55 : vector<2x128xf32>
    %c0_5 = arith.constant 0 : index
    %c0_6 = arith.constant 0 : index
    %57 = vector.load %arg4[%c0_5, %c0_6] : memref<2x128xf32, #tpu.memory_space<vmem>>, vector<2x128xf32>
    tpu.vector_store %arg4[%c0_5, %c0_6], %56 {strides = array<i32>} : memref<2x128xf32, #tpu.memory_space<vmem>>, vector<2x128xf32>,
    return
  }
  func.func @transform_0(%arg0: i32) -> (i32, i32) {
    %c0_i32 = arith.constant 0 : i32
    %c0_i32_0 = arith.constant 0 : i32
    return %arg0, %c0_i32 : i32, i32
  }
  func.func @transform_1(%arg0: i32) -> (i32, i32) {
    %c0_i32 = arith.constant 0 : i32
    %c0_i32_0 = arith.constant 0 : i32
    %c0_i32_1 = arith.constant 0 : i32
    return %c0_i32, %c0_i32_0 : i32, i32
  }
  func.func @transform_2(%arg0: i32) -> (i32, i32) {
    %c0_i32 = arith.constant 0 : i32
    %c0_i32_0 = arith.constant 0 : i32
    %c0_i32_1 = arith.constant 0 : i32
    return %c0_i32, %c0_i32_0 : i32, i32
  }
  func.func @transform_3(%arg0: i32) -> (i32, i32) {
    %c0_i32 = arith.constant 0 : i32
    %c0_i32_0 = arith.constant 0 : i32
    return %arg0, %c0_i32 : i32, i32
  }
}

</mosaic_0001>

<llo_original>
// kernel: tpu_custom_call.1
$region0: #{tpu_custom_call.1}
  #allocation0 [shape = 'u32[]', space=smem, size = 0x4, offset = 0x4, fixed_abs, tag = 'smem constant byte address 0x4 - core index']
  #allocation1 [shape = 'u32[144,128]{1,0:T(1,128)}', space=vmem, size = 0x12000, scoped, tag = 'internal scratch']
  %s0 = inlined_call_operand.hbm [shape: s32[2,8], index: 0, kind: input, shape index: {}]
  %s1 = inlined_call_operand.hbm [shape: f32[30,128], index: 1, kind: input, shape index: {}]
  %s2 = inlined_call_operand.vmem [shape: f32[1,128], index: 2, kind: input, shape index: {}]
  %s3 = inlined_call_operand.hbm [shape: f32[2,128], index: 3, kind: output, shape index: {}]
  %s4 = sld [smem:[#allocation0]]
  $region30: #{tpu_custom_call.1} parent=0
    _
  %s6 = ssub.s32 1, %s4
  %s7 = scalar_select 0, %s6, %s4
  $region1: #{tpu_custom_call.1} parent=0
    #allocation2 [shape = 'u8[1024]{0}', space=vmem, size = 0x400, scoped, tag = 'input window, operand 0, single buffered']
    #allocation3 [shape = 's32[1]{0}', space=sflag, size = 0x4, scoped, tag = 'scoped memory for tpu_custom_call.1']
    #allocation4 [shape = 's32[1]{0}', space=sflag, size = 0x4, scoped, tag = 'scoped memory for tpu_custom_call.1']
    #allocation5 [shape = 'u8[16384]{0}', space=vmem, size = 0x4000, scoped, tag = 'input window, operand 1, single buffered']
    #allocation6 [shape = 's32[1]{0}', space=sflag, size = 0x4, scoped, tag = 'scoped memory for tpu_custom_call.1']
    #allocation7 [shape = 'u8[1024]{0}', space=vmem, size = 0x400, scoped, tag = 'output window, operand 0, single buffered']
    %8 = vsyncpa [#allocation3], 0
    %9 = vsyncpa [#allocation6], 0
    %10 = vsyncpa [#allocation4], 0
    // Predicated region
    $region2: #{tpu_custom_call.1} parent=1 // pred_check
      _
    $region3: #{tpu_custom_call.1} parent=1 // pred_check_branch
      %12 = sbr.rel (0) target = $region5
    $region4: #{tpu_custom_call.1} parent=1 // pred_region
      %s14 = ssub.s32 32, 32
      %15 = vsyncadd [#allocation3], %s14
      %s17 = sshll.u32 [#allocation2], 4
      %s18 = int_to_ptr.vmem [resolvable:$true] %s17
      %20 = dma.hbm_to_vmem [thread:$0]  %s0, 32, %s18, [#allocation3]
    $region5: #{tpu_custom_call.1} parent=1 // pred_fallthru
      _
    // Predicated region
    $region6: #{tpu_custom_call.1} parent=1 // pred_check
      _
    $region7: #{tpu_custom_call.1} parent=1 // pred_check_branch
      %22 = sbr.rel (0) target = $region9
    $region8: #{tpu_custom_call.1} parent=1 // pred_region
      %s24 = ssub.s32 512, 512
      %25 = vsyncadd [#allocation6], %s24
      %s26 = sshll.u32 [#allocation5], 4
      %s27 = int_to_ptr.vmem [resolvable:$true] %s26
      %32 = dma.hbm_to_vmem [thread:$0]  %s1, 512, %s27, [#allocation6], 128, 128, 8
    $region9: #{tpu_custom_call.1} parent=1 // pred_fallthru
      _
    // Predicated region
    $region10: #{tpu_custom_call.1} parent=1 // pred_check
      _
    $region11: #{tpu_custom_call.1} parent=1 // pred_check_branch
      %34 = sbr.rel (0) target = $region13
    $region12: #{tpu_custom_call.1} parent=1 // pred_region
      _
    $region13: #{tpu_custom_call.1} parent=1 // pred_fallthru
      _
    // Predicated region
    $region14: #{tpu_custom_call.1} parent=1 // pred_check
      _
    $region15: #{tpu_custom_call.1} parent=1 // pred_check_branch
      %36 = sbr.rel (0) target = $region17
    $region16: #{tpu_custom_call.1} parent=1 // pred_region
      %37 = dma.done [#allocation3], 32
    $region17: #{tpu_custom_call.1} parent=1 // pred_fallthru
      _
    // Predicated region
    $region18: #{tpu_custom_call.1} parent=1 // pred_check
      _
    $region19: #{tpu_custom_call.1} parent=1 // pred_check_branch
      %39 = sbr.rel (0) target = $region21
    $region20: #{tpu_custom_call.1} parent=1 // pred_region
      %40 = dma.done [#allocation6], 512
    $region21: #{tpu_custom_call.1} parent=1 // pred_fallthru
      _
    %v41 = vld [vmem:[#allocation2] sm:$0x3]
    %v42 = vlaneseq
    %v43 = vand.u32 %v42, 127
    %44 = vset.pattern.permute.xlu0 0
    %45 = vperm.xlu0 %44, %v41
    %v46 = vpop.permute.xlu0 %45
    %vm47 = vcmp.eq.s32.totalorder %v46, %v43
    %v48 = vsel %vm47, 1, 0
    %49 = vset.pattern.permute.xlu0 1
    %50 = vperm.xlu0 %49, %v41
    %v51 = vpop.permute.xlu0 %50
    %vm52 = vcmp.eq.s32.totalorder %v51, %v43
    %v53 = vsel %vm52, 1, 0
    %v54 = vadd.s32 %v48, %v53
    %55 = vset.pattern.permute.xlu0 2
    %56 = vperm.xlu0 %55, %v41
    %v57 = vpop.permute.xlu0 %56
    %vm58 = vcmp.eq.s32.totalorder %v57, %v43
    %v59 = vsel %vm58, 1, 0
    %v60 = vadd.s32 %v54, %v59
    %61 = vset.pattern.permute.xlu0 3
    %62 = vperm.xlu0 %61, %v41
    %v63 = vpop.permute.xlu0 %62
    %vm64 = vcmp.eq.s32.totalorder %v63, %v43
    %v65 = vsel %vm64, 1, 0
    %v66 = vadd.s32 %v60, %v65
    %67 = vset.pattern.permute.xlu0 4
    %68 = vperm.xlu0 %67, %v41
    %v69 = vpop.permute.xlu0 %68
    %vm70 = vcmp.eq.s32.totalorder %v69, %v43
    %v71 = vsel %vm70, 1, 0
    %v72 = vadd.s32 %v66, %v71
    %73 = vset.pattern.permute.xlu0 5
    %74 = vperm.xlu0 %73, %v41
    %v75 = vpop.permute.xlu0 %74
    %vm76 = vcmp.eq.s32.totalorder %v75, %v43
    %v77 = vsel %vm76, 1, 0
    %v78 = vadd.s32 %v72, %v77
    %79 = vset.pattern.permute.xlu0 6
    %80 = vperm.xlu0 %79, %v41
    %v81 = vpop.permute.xlu0 %80
    %vm82 = vcmp.eq.s32.totalorder %v81, %v43
    %v83 = vsel %vm82, 1, 0
    %v84 = vadd.s32 %v78, %v83
    %85 = vset.pattern.permute.xlu0 7
    %86 = vperm.xlu0 %85, %v41
    %v87 = vpop.permute.xlu0 %86
    %vm88 = vcmp.eq.s32.totalorder %v87, %v43
    %v89 = vsel %vm88, 1, 0
    %v90 = vadd.s32 %v84, %v89
    %v91 = vcvt.s32.f32 %v90
    %v92 = vld [vmem:[#allocation5] sm:$0xff]
    %v93 = vld [vmem:[#allocation5 + $0x8] sm:$0xff]
    %v94 = vld [vmem:[#allocation5 + $0x10] sm:$0xff]
    %v95 = vld [vmem:[#allocation5 + $0x18] sm:$0x3f]
    %v96 = vld [vmem:[%s2] sm:$0x1]
    %v98 = vlaneseq
    %v99 = vshrl.u32 %v98, 7
    %v100 = vsub.s32 0, %v99
    %v101 = vrot.slane %v96, %v100
    %vm103 = vcmask 244736
    %v105 = vsel %vm103, %v91, 0
    %vm107 = vcmask 1045504
    %v109 = vsel %vm107, %v95, 0
    %111 = vmatprep.subr.mxu0 0.0
    %112 = vmatpush1.msra.mxu0 0.0
    %113 = vmatprep.subr.mxu0 0.0
    %114 = vmatpush1.msra.mxu0 0.0
    %115 = vmatprep.subr.mxu0 0.0
    %116 = vmatpush1.msra.mxu0 0.0
    %117 = vmatprep.subr.mxu0 0.0
    %118 = vmatpush1.msra.mxu0 0.0
    %119 = vmatprep.subr.mxu0 0.0
    %120 = vmatpush1.msra.mxu0 0.0
    %121 = vmatprep.subr.mxu0 0.0
    %122 = vmatpush1.msra.mxu0 0.0
    %123 = vmatprep.subr.mxu0 0.0
    %124 = vmatpush1.msra.mxu0 0.0
    %125 = vmatprep.subr.mxu0 0.0
    %126 = vmatpush1.msra.mxu0 0.0
    %127 = vmatprep.subr.mxu0 0.0
    %128 = vmatpush1.msra.mxu0 0.0
    %129 = vmatprep.subr.mxu0 0.0
    %130 = vmatpush1.msra.mxu0 0.0
    %131 = vmatprep.subr.mxu0 0.0
    %132 = vmatpush1.msra.mxu0 0.0
    %133 = vmatprep.subr.mxu0 0.0
    %134 = vmatpush1.msra.mxu0 0.0
    %135 = vmatprep.subr.mxu0 0.0
    %136 = vmatpush1.msra.mxu0 %v109
    %137 = vmatprep.subr.mxu0 0.0
    %138 = vmatpush1.msra.mxu0 %v94
    %139 = vmatprep.subr.mxu0 0.0
    %140 = vmatpush1.msra.mxu0 %v93
    %141 = vmatprep.subr.mxu0 0.0
    %142 = vmatpush1.msra.mxu0 %v92
    %143 = vmatprep.subr.mxu0 0.0
    %144 = vmatpush2.msra.mxu0 0.0
    %145 = vmatprep.subr.mxu0 0.0
    %146 = vmatpush2.msra.mxu0 0.0
    %147 = vmatprep.subr.mxu0 0.0
    %148 = vmatpush2.msra.mxu0 0.0
    %149 = vmatprep.subr.mxu0 0.0
    %150 = vmatpush2.msra.mxu0 0.0
    %151 = vmatprep.subr.mxu0 0.0
    %152 = vmatpush2.msra.mxu0 0.0
    %153 = vmatprep.subr.mxu0 0.0
    %154 = vmatpush2.msra.mxu0 0.0
    %155 = vmatprep.subr.mxu0 0.0
    %156 = vmatpush2.msra.mxu0 0.0
    %157 = vmatprep.subr.mxu0 0.0
    %158 = vmatpush2.msra.mxu0 0.0
    %159 = vmatprep.subr.mxu0 0.0
    %160 = vmatpush2.msra.mxu0 0.0
    %161 = vmatprep.subr.mxu0 0.0
    %162 = vmatpush2.msra.mxu0 0.0
    %163 = vmatprep.subr.mxu0 0.0
    %164 = vmatpush2.msra.mxu0 0.0
    %165 = vmatprep.subr.mxu0 0.0
    %166 = vmatpush2.msra.mxu0 0.0
    %167 = vmatprep.subr.mxu0 0.0
    %168 = vmatpush2.msra.mxu0 0.0
    %169 = vmatprep.subr.mxu0 0.0
    %170 = vmatpush2.msra.mxu0 0.0
    %171 = vmatprep.subr.mxu0 0.0
    %172 = vmatpush2.msra.mxu0 0.0
    %173 = vmatprep.subr.mxu0 0.0
    %174 = vmatpush2.msra.mxu0 0.0
    %175 = vmatprep.mubr.f32.mxu0 0.0
    %176 = vmatmul.mubr.f32.gmra.mxu0 %v105
    %v177 = vpop.f32.mrf.mxu0
    %v178 = vadd.f32 %v101, %v177
    %v179 = vpop.f32.mrf.mxu0
    %180 = vdwg.mxu0
    %181 = vst [vmem:[#allocation7] sm:$0x3] %v178
    // Predicated region
    $region22: #{tpu_custom_call.1} parent=1 // pred_check
      _
    $region23: #{tpu_custom_call.1} parent=1 // pred_check_branch
      %183 = sbr.rel (0) target = $region25
    $region24: #{tpu_custom_call.1} parent=1 // pred_region
      %s185 = ssub.s32 32, 32
      %186 = vsyncadd [#allocation4], %s185
      %s188 = sshll.u32 [#allocation7], 4
      %s189 = int_to_ptr.vmem [resolvable:$true] %s188
      %191 = dma.vmem_to_hbm [thread:$0]  %s189, 32, %s3, [#allocation4]
    $region25: #{tpu_custom_call.1} parent=1 // pred_fallthru
      _
    // Predicated region
    $region26: #{tpu_custom_call.1} parent=1 // pred_check
      _
    $region27: #{tpu_custom_call.1} parent=1 // pred_check_branch
      %193 = sbr.rel (0) target = $region29
    $region28: #{tpu_custom_call.1} parent=1 // pred_region
      %194 = dma.done [#allocation4], 32
    $region29: #{tpu_custom_call.1} parent=1 // pred_fallthru
      _
    %195 = vsyncpa [#allocation3], 1
    %196 = vsyncpa [#allocation6], 1
    %197 = vsyncpa [#allocation4], 1

</llo_original>
